<compile_context>
chip_gen: v6e
topology: v6e:2x2x1
jax: 0.10.0
libtpu: 0.0.40
codegen_flags: <defaults>
</compile_context>

<pallas_src>
import jax
import jax.numpy as jnp
from jax import lax
from jax.experimental import pallas as pl
from jax.experimental.pallas import tpu as pltpu

_LANE = 128


def _pool_out_dim(size, kernel_size, stride):
    """PyTorch MaxPool2d output size with ceil_mode=True, padding=0."""
    out = -(-(size - kernel_size) // stride) + 1          # ceil((size-k)/s) + 1
    if (out - 1) * stride >= size:                        # last window must start in-bounds
        out -= 1
    return out


def _neg_limit(dtype):
    dtype = jnp.dtype(dtype)
    if jnp.issubdtype(dtype, jnp.floating):
        return float("-inf")
    return int(jnp.iinfo(dtype).min)


def _maxpool_shifted_kernel(x_ref, o_ref):
    """x_ref: (k*k, OH, OW, LT) shifted window views; o_ref: (OH, OW, LT).

    Pure elementwise maxima over the leading window axis (VPU slots only);
    lanes carry N*C so every vreg is dense and stores are unmasked.
    """
    acc = x_ref[0]
    for i in range(1, x_ref.shape[0]):
        acc = jnp.maximum(acc, x_ref[i])
    o_ref[...] = acc


def _choose_lane_tile(kk, oh, ow, itemsize):
    """Largest 128-multiple lane tile whose double-buffered in+out blocks stay
    well under the smallest scoped-VMEM defaults across v5e/v6e/v7x."""
    budget = 8 * 1024 * 1024                              # conservative (v7x: 64 MiB VMEM)
    per_lane = (kk + 1) * oh * ow * itemsize * 2          # input + output, double-buffered
    max_tile = max(_LANE, (budget // per_lane) // _LANE * _LANE)
    return int(min(max_tile, 1024))


def maxpool2d_ceil_pallas(x, kernel_size=3, stride=None, *, lane_tile=None):
    """MaxPool2d(kernel_size, stride=kernel_size, ceil_mode=True) on NCHW input."""
    if stride is None:
        stride = kernel_size
    k, s = kernel_size, stride
    n, c, h, w = x.shape
    oh = _pool_out_dim(h, k, s)
    ow = _pool_out_dim(w, k, s)
    l = n * c
    kk = k * k
    itemsize = jnp.dtype(x.dtype).itemsize
    neg = _neg_limit(x.dtype)

    # ---- layout plumbing (plain XLA, fused into one copy) --------------------
    # NCHW -> (H, W, N*C): lane axis carries N*C.
    xt = jnp.reshape(jnp.transpose(x, (2, 3, 0, 1)), (h, w, l))
    # ceil_mode: pad bottom/right with -inf so every window is a full k x k.
    pad_h = max(0, (oh - 1) * s + k - h)
    pad_w = max(0, (ow - 1) * s + k - w)
    if pad_h or pad_w:
        xt = jnp.pad(xt, ((0, pad_h), (0, pad_w), (0, 0)), constant_values=neg)
    # Shifted views: views[kh*k+kw][oy, ox, :] == x_padded[oy*s+kh, ox*s+kw, :].
    views = [
        lax.slice(xt, (kh, kw, 0),
                  (kh + (oh - 1) * s + 1, kw + (ow - 1) * s + 1, l),
                  (s, s, 1))
        for kh in range(k) for kw in range(k)
    ]
    xs = jnp.stack(views, axis=0)                         # (k*k, OH, OW, N*C)

    # ---- lane tiling ----------------------------------------------------------
    if lane_tile is None:
        lane_tile = _choose_lane_tile(kk, oh, ow, itemsize)
    if l <= lane_tile or l <= _LANE:
        lt, lp = l, l                                     # single block, full lane extent
    else:
        lt = lane_tile
        lp = -(-l // lt) * lt
        if lp != l:
            xs = jnp.pad(xs, ((0, 0), (0, 0), (0, 0), (0, lp - l)))
    grid_l = lp // lt
    # NOTE: OH/OW are kept whole per block (fine for pooling-sized spatial dims);
    # extremely large spatial extents would additionally want an OH grid axis.

    cost = pl.CostEstimate(
        flops=max(kk - 1, 1) * oh * ow * lp,
        transcendentals=0,
        bytes_accessed=(kk + 1) * oh * ow * lp * itemsize,
    )

    pooled = pl.pallas_call(
        _maxpool_shifted_kernel,
        out_shape=jax.ShapeDtypeStruct((oh, ow, lp), x.dtype),
        grid=(grid_l,),
        in_specs=[pl.BlockSpec((kk, oh, ow, lt), lambda i: (0, 0, 0, i))],
        out_specs=pl.BlockSpec((oh, ow, lt), lambda i: (0, 0, i)),
        compiler_params=pltpu.CompilerParams(
            dimension_semantics=("parallel",)),           # shard lane tiles across TCs (v7x)
        cost_estimate=cost,
    )(xs)

    # ---- back to NCHW ---------------------------------------------------------
    pooled = pooled[:, :, :l].reshape(oh, ow, n, c)
    return jnp.transpose(pooled, (2, 3, 0, 1))


def maxpool2d_ceil_reference(x, kernel_size=3, stride=None):
    """Pure-XLA reference / small-input path (reduce_window with -inf edge pad)."""
    if stride is None:
        stride = kernel_size
    k, s = kernel_size, stride
    _, _, h, w = x.shape
    oh = _pool_out_dim(h, k, s)
    ow = _pool_out_dim(w, k, s)
    pad_h = max(0, (oh - 1) * s + k - h)
    pad_w = max(0, (ow - 1) * s + k - w)
    init = jnp.asarray(_neg_limit(x.dtype), dtype=x.dtype)
    return lax.reduce_window(
        x, init, lax.max,
        window_dimensions=(1, 1, k, k),
        window_strides=(1, 1, s, s),
        padding=((0, 0), (0, 0), (0, pad_h), (0, pad_w)))


_PALLAS_MIN_BYTES = 256 * 1024   # below this, kernel launch overhead dominates


def onenet_forward(x):
    """OneNet.forward: MaxPool2d(kernel_size=3, ceil_mode=True) on NCHW input."""
    if x.size * jnp.dtype(x.dtype).itemsize < _PALLAS_MIN_BYTES:
        return maxpool2d_ceil_reference(x, 3)
    return maxpool2d_ceil_pallas(x, 3)


if __name__ == "__main__":
    key = jax.random.PRNGKey(0)
    k1, k2, k3 = jax.random.split(key, 3)

    # 1) Module-shaped input (reshape(-1, 1, 5, 5)) with a batch big enough to
    #    give the lane axis real work: (256, 1, 5, 5) -> 256 lanes.
    x1 = jax.random.normal(k1, (256, 1, 5, 5), dtype=jnp.float32)
    out1 = jax.block_until_ready(maxpool2d_ceil_pallas(x1, 3))
    ref1 = maxpool2d_ceil_reference(x1, 3)
    assert out1.shape == (256, 1, 2, 2), out1.shape
    assert jnp.array_equal(out1, ref1), "mismatch (default lane tile)"

    # 2) Same input with a forced 128-lane tile -> multi-step grid exercising
    #    the BlockSpec pipelining over the lane axis.
    out1t = jax.block_until_ready(maxpool2d_ceil_pallas(x1, 3, lane_tile=128))
    assert jnp.array_equal(out1t, ref1), "mismatch (tiled lane axis)"

    # 3) Larger spatial extent: partial right/bottom ceil_mode windows at 16x16.
    x2 = jax.random.normal(k2, (2, 4, 16, 16), dtype=jnp.float32)
    out2 = jax.block_until_ready(maxpool2d_ceil_pallas(x2, 3))
    assert out2.shape == (2, 4, 6, 6), out2.shape
    assert jnp.array_equal(out2, maxpool2d_ceil_reference(x2, 3)), "mismatch (16x16)"

    # 4) The literal OneNet workload (2x1x5x5) through the size dispatcher
    #    (pure-XLA path for tiny tensors).
    x3 = jnp.reshape(jax.random.normal(k3, (2 * 1 * 5 * 5,), dtype=jnp.float32),
                     (-1, 1, 5, 5))
    out3 = jax.block_until_ready(onenet_forward(x3))
    assert out3.shape == (2, 1, 2, 2), out3.shape
    assert jnp.array_equal(out3, maxpool2d_ceil_reference(x3, 3)), "mismatch (tiny)"

    print("KERNEL_OK")
</pallas_src>

<mosaic_0001>
module attributes {stable_mosaic.version = 11 : i64} {
  func.func @_maxpool_shifted_kernel(%arg0: i32, %arg1: memref<9x2x2x256xf32, #tpu.memory_space<vmem>>, %arg2: memref<2x2x256xf32, #tpu.memory_space<vmem>>) attributes {dimension_semantics = [#tpu.dimension_semantics<parallel>], iteration_bounds = array<i64: 1>, scalar_prefetch = 0 : i64, scratch_operands = 0 : i64, tpu.core_type = #tpu.core_type<tc>, window_params = [{transform_indices = @transform_0, window_bounds = array<i64: 9, 2, 2, 256>}, {transform_indices = @transform_1, window_bounds = array<i64: 2, 2, 256>}]} {
    %c0 = arith.constant 0 : index
    %c0_0 = arith.constant 0 : index
    %c0_1 = arith.constant 0 : index
    %c0_2 = arith.constant 0 : index
    %0 = vector.load %arg1[%c0, %c0_0, %c0_1, %c0_2] : memref<9x2x2x256xf32, #tpu.memory_space<vmem>>, vector<1x2x2x256xf32>
    %1 = vector.shape_cast %0 : vector<1x2x2x256xf32> to vector<2x2x256xf32>
    %c1 = arith.constant 1 : index
    %c0_3 = arith.constant 0 : index
    %c0_4 = arith.constant 0 : index
    %c0_5 = arith.constant 0 : index
    %2 = vector.load %arg1[%c1, %c0_3, %c0_4, %c0_5] : memref<9x2x2x256xf32, #tpu.memory_space<vmem>>, vector<1x2x2x256xf32>
    %3 = vector.shape_cast %2 : vector<1x2x2x256xf32> to vector<2x2x256xf32>
    %4 = arith.maximumf %1, %3 : vector<2x2x256xf32>
    %c2 = arith.constant 2 : index
    %c0_6 = arith.constant 0 : index
    %c0_7 = arith.constant 0 : index
    %c0_8 = arith.constant 0 : index
    %5 = vector.load %arg1[%c2, %c0_6, %c0_7, %c0_8] : memref<9x2x2x256xf32, #tpu.memory_space<vmem>>, vector<1x2x2x256xf32>
    %6 = vector.shape_cast %5 : vector<1x2x2x256xf32> to vector<2x2x256xf32>
    %7 = arith.maximumf %4, %6 : vector<2x2x256xf32>
    %c3 = arith.constant 3 : index
    %c0_9 = arith.constant 0 : index
    %c0_10 = arith.constant 0 : index
    %c0_11 = arith.constant 0 : index
    %8 = vector.load %arg1[%c3, %c0_9, %c0_10, %c0_11] : memref<9x2x2x256xf32, #tpu.memory_space<vmem>>, vector<1x2x2x256xf32>
    %9 = vector.shape_cast %8 : vector<1x2x2x256xf32> to vector<2x2x256xf32>
    %10 = arith.maximumf %7, %9 : vector<2x2x256xf32>
    %c4 = arith.constant 4 : index
    %c0_12 = arith.constant 0 : index
    %c0_13 = arith.constant 0 : index
    %c0_14 = arith.constant 0 : index
    %11 = vector.load %arg1[%c4, %c0_12, %c0_13, %c0_14] : memref<9x2x2x256xf32, #tpu.memory_space<vmem>>, vector<1x2x2x256xf32>
    %12 = vector.shape_cast %11 : vector<1x2x2x256xf32> to vector<2x2x256xf32>
    %13 = arith.maximumf %10, %12 : vector<2x2x256xf32>
    %c5 = arith.constant 5 : index
    %c0_15 = arith.constant 0 : index
    %c0_16 = arith.constant 0 : index
    %c0_17 = arith.constant 0 : index
    %14 = vector.load %arg1[%c5, %c0_15, %c0_16, %c0_17] : memref<9x2x2x256xf32, #tpu.memory_space<vmem>>, vector<1x2x2x256xf32>
    %15 = vector.shape_cast %14 : vector<1x2x2x256xf32> to vector<2x2x256xf32>
    %16 = arith.maximumf %13, %15 : vector<2x2x256xf32>
    %c6 = arith.constant 6 : index
    %c0_18 = arith.constant 0 : index
    %c0_19 = arith.constant 0 : index
    %c0_20 = arith.constant 0 : index
    %17 = vector.load %arg1[%c6, %c0_18, %c0_19, %c0_20] : memref<9x2x2x256xf32, #tpu.memory_space<vmem>>, vector<1x2x2x256xf32>
    %18 = vector.shape_cast %17 : vector<1x2x2x256xf32> to vector<2x2x256xf32>
    %19 = arith.maximumf %16, %18 : vector<2x2x256xf32>
    %c7 = arith.constant 7 : index
    %c0_21 = arith.constant 0 : index
    %c0_22 = arith.constant 0 : index
    %c0_23 = arith.constant 0 : index
    %20 = vector.load %arg1[%c7, %c0_21, %c0_22, %c0_23] : memref<9x2x2x256xf32, #tpu.memory_space<vmem>>, vector<1x2x2x256xf32>
    %21 = vector.shape_cast %20 : vector<1x2x2x256xf32> to vector<2x2x256xf32>
    %22 = arith.maximumf %19, %21 : vector<2x2x256xf32>
    %c8 = arith.constant 8 : index
    %c0_24 = arith.constant 0 : index
    %c0_25 = arith.constant 0 : index
    %c0_26 = arith.constant 0 : index
    %23 = vector.load %arg1[%c8, %c0_24, %c0_25, %c0_26] : memref<9x2x2x256xf32, #tpu.memory_space<vmem>>, vector<1x2x2x256xf32>
    %24 = vector.shape_cast %23 : vector<1x2x2x256xf32> to vector<2x2x256xf32>
    %25 = arith.maximumf %22, %24 : vector<2x2x256xf32>
    %c0_27 = arith.constant 0 : index
    %c0_28 = arith.constant 0 : index
    %c0_29 = arith.constant 0 : index
    %26 = vector.load %arg2[%c0_27, %c0_28, %c0_29] : memref<2x2x256xf32, #tpu.memory_space<vmem>>, vector<2x2x256xf32>
    tpu.vector_store %arg2[%c0_27, %c0_28, %c0_29], %25 {strides = array<i32>} : memref<2x2x256xf32, #tpu.memory_space<vmem>>, vector<2x2x256xf32>,
    return
  }
  func.func @transform_0(%arg0: i32) -> (i32, i32, i32, i32) {
    %c0_i32 = arith.constant 0 : i32
    %c0_i32_0 = arith.constant 0 : i32
    %c0_i32_1 = arith.constant 0 : i32
    %c0_i32_2 = arith.constant 0 : i32
    return %c0_i32, %c0_i32_0, %c0_i32_1, %arg0 : i32, i32, i32, i32
  }
  func.func @transform_1(%arg0: i32) -> (i32, i32, i32) {
    %c0_i32 = arith.constant 0 : i32
    %c0_i32_0 = arith.constant 0 : i32
    %c0_i32_1 = arith.constant 0 : i32
    return %c0_i32, %c0_i32_0, %arg0 : i32, i32, i32
  }
}

</mosaic_0001>

<llo_original>
// kernel: tpu_custom_call.1
$region0: #{tpu_custom_call.1}
  #allocation0 [shape = 'u32[]', space=smem, size = 0x4, offset = 0x4, fixed_abs, tag = 'smem constant byte address 0x4 - core index']
  #allocation1 [shape = 'u32[144,128]{1,0:T(1,128)}', space=vmem, size = 0x12000, scoped, tag = 'internal scratch']
  %s0 = inlined_call_operand.hbm [shape: f32[9,2,2,256], index: 0, kind: input, shape index: {}]
  %s1 = inlined_call_operand.hbm [shape: f32[2,2,256], index: 1, kind: output, shape index: {}]
  %s2 = sld [smem:[#allocation0]]
  $region18: #{tpu_custom_call.1} parent=0
    _
  %s4 = ssub.s32 1, %s2
  %s5 = scalar_select 0, %s4, %s2
  $region1: #{tpu_custom_call.1} parent=0
    #allocation2 [shape = 'u8[36864]{0}', space=vmem, size = 0x9000, scoped, tag = 'input window, operand 0, single buffered']
    #allocation3 [shape = 's32[1]{0}', space=sflag, size = 0x4, scoped, tag = 'scoped memory for tpu_custom_call.1']
    #allocation4 [shape = 's32[1]{0}', space=sflag, size = 0x4, scoped, tag = 'scoped memory for tpu_custom_call.1']
    #allocation5 [shape = 'u8[4096]{0}', space=vmem, size = 0x1000, scoped, tag = 'output window, operand 0, single buffered']
    %6 = vsyncpa [#allocation3], 0
    %7 = vsyncpa [#allocation4], 0
    // Predicated region
    $region2: #{tpu_custom_call.1} parent=1 // pred_check
      _
    $region3: #{tpu_custom_call.1} parent=1 // pred_check_branch
      %9 = sbr.rel (0) target = $region5
    $region4: #{tpu_custom_call.1} parent=1 // pred_region
      %s11 = ssub.s32 1152, 1152
      %12 = vsyncadd [#allocation3], %s11
      %s13 = sshll.u32 [#allocation2], 4
      %s14 = int_to_ptr.vmem [resolvable:$true] %s13
      %19 = dma.hbm_to_vmem [thread:$0]  %s0, 1152, %s14, [#allocation3], 64, 64, 4
    $region5: #{tpu_custom_call.1} parent=1 // pred_fallthru
      _
    // Predicated region
    $region6: #{tpu_custom_call.1} parent=1 // pred_check
      _
    $region7: #{tpu_custom_call.1} parent=1 // pred_check_branch
      %21 = sbr.rel (0) target = $region9
    $region8: #{tpu_custom_call.1} parent=1 // pred_region
      %22 = dma.done [#allocation3], 1152
    $region9: #{tpu_custom_call.1} parent=1 // pred_fallthru
      _
    %v23 = vld [vmem:[#allocation2] sm:$0xf]
    %v24 = vld [vmem:[#allocation2 + $0x4] sm:$0xf]
    %s25 = scalar_lea.vmem [#allocation2], 8
    %v26 = vld [vmem:[%s25] sm:$0xf]
    %v27 = vld [vmem:[%s25 + $0x4] sm:$0xf]
    %v28 = vmax.f32 %v23, %v26
    %v29 = vmax.f32 %v24, %v27
    %s30 = scalar_lea.vmem [#allocation2], 16
    %v31 = vld [vmem:[%s30] sm:$0xf]
    %v32 = vld [vmem:[%s30 + $0x4] sm:$0xf]
    %v33 = vmax.f32 %v28, %v31
    %v34 = vmax.f32 %v29, %v32
    %s35 = scalar_lea.vmem [#allocation2], 24
    %v36 = vld [vmem:[%s35] sm:$0xf]
    %v37 = vld [vmem:[%s35 + $0x4] sm:$0xf]
    %v38 = vmax.f32 %v33, %v36
    %v39 = vmax.f32 %v34, %v37
    %s40 = scalar_lea.vmem [#allocation2], 32
    %v41 = vld [vmem:[%s40] sm:$0xf]
    %v42 = vld [vmem:[%s40 + $0x4] sm:$0xf]
    %v43 = vmax.f32 %v38, %v41
    %v44 = vmax.f32 %v39, %v42
    %s45 = scalar_lea.vmem [#allocation2], 40
    %v46 = vld [vmem:[%s45] sm:$0xf]
    %v47 = vld [vmem:[%s45 + $0x4] sm:$0xf]
    %v48 = vmax.f32 %v43, %v46
    %v49 = vmax.f32 %v44, %v47
    %s50 = scalar_lea.vmem [#allocation2], 48
    %v51 = vld [vmem:[%s50] sm:$0xf]
    %v52 = vld [vmem:[%s50 + $0x4] sm:$0xf]
    %v53 = vmax.f32 %v48, %v51
    %v54 = vmax.f32 %v49, %v52
    %s55 = scalar_lea.vmem [#allocation2], 56
    %v56 = vld [vmem:[%s55] sm:$0xf]
    %v57 = vld [vmem:[%s55 + $0x4] sm:$0xf]
    %v58 = vmax.f32 %v53, %v56
    %v59 = vmax.f32 %v54, %v57
    %s60 = scalar_lea.vmem [#allocation2], 64
    %v61 = vld [vmem:[%s60] sm:$0xf]
    %v62 = vld [vmem:[%s60 + $0x4] sm:$0xf]
    %v63 = vmax.f32 %v58, %v61
    %v64 = vmax.f32 %v59, %v62
    %65 = vst [vmem:[#allocation5] sm:$0xf] %v63
    %66 = vst [vmem:[#allocation5 + $0x4] sm:$0xf] %v64
    // Predicated region
    $region10: #{tpu_custom_call.1} parent=1 // pred_check
      _
    $region11: #{tpu_custom_call.1} parent=1 // pred_check_branch
      %68 = sbr.rel (0) target = $region13
    $region12: #{tpu_custom_call.1} parent=1 // pred_region
      %s70 = ssub.s32 128, 128
      %71 = vsyncadd [#allocation4], %s70
      %s72 = sshll.u32 [#allocation5], 4
      %s73 = int_to_ptr.vmem [resolvable:$true] %s72
      %78 = dma.vmem_to_hbm [thread:$0]  %s73, 128, %s1, [#allocation4], 64, 64, 4
    $region13: #{tpu_custom_call.1} parent=1 // pred_fallthru
      _
    // Predicated region
    $region14: #{tpu_custom_call.1} parent=1 // pred_check
      _
    $region15: #{tpu_custom_call.1} parent=1 // pred_check_branch
      %80 = sbr.rel (0) target = $region17
    $region16: #{tpu_custom_call.1} parent=1 // pred_region
      %81 = dma.done [#allocation4], 128
    $region17: #{tpu_custom_call.1} parent=1 // pred_fallthru
      _
    %82 = vsyncpa [#allocation3], 1
    %83 = vsyncpa [#allocation4], 1

</llo_original>
